<compile_context>
chip_gen: v7x
topology: tpu7x:2x2x1
jax: 0.10.0
libtpu: 0.0.40
codegen_flags: <defaults>
</compile_context>

<pallas_src>
import functools

import jax
import jax.numpy as jnp
from jax.experimental import pallas as pl
from jax.experimental.pallas import tpu as pltpu


def _round_up(x, m):
    return ((x + m - 1) // m) * m


def _uwan_kernel(x_ref,
                 we1_ref, be1_ref, we2_ref, be2_ref,
                 wd1_ref, bd1_ref, wd2_ref, bd2_ref,
                 out_ref):
    """One batch tile.  Output columns:
         [0, d_out)             -> y
         [d_out, d_out+latent)  -> z
         [d_out+latent, width)  -> zero padding (sliced off in the wrapper)
    """
    latent = we2_ref.shape[1]
    d_out = wd2_ref.shape[1]

    x = x_ref[...]                                     # [B, d_in] bf16

    # ---- encoder ----  (MXU accumulates in f32; activations in f32)
    h1 = jnp.tanh(
        jnp.dot(x, we1_ref[...], preferred_element_type=jnp.float32)
        + be1_ref[...])
    z = (jnp.dot(h1.astype(we2_ref.dtype), we2_ref[...],
                 preferred_element_type=jnp.float32)
         + be2_ref[...])

    # ---- decoder ----
    h2 = jnp.tanh(
        jnp.dot(z.astype(wd1_ref.dtype), wd1_ref[...],
                preferred_element_type=jnp.float32)
        + bd1_ref[...])
    logits = (jnp.dot(h2.astype(wd2_ref.dtype), wd2_ref[...],
                      preferred_element_type=jnp.float32)
              + bd2_ref[...])
    y = jax.nn.sigmoid(logits)

    # Lane-dense writeback: fill the full 128-wide tile, then overwrite the
    # y / z column ranges.  The HBM writeback of this tile is unmasked.
    out_ref[...] = jnp.zeros(out_ref.shape, out_ref.dtype)
    out_ref[:, 0:d_out] = y.astype(out_ref.dtype)
    out_ref[:, d_out:d_out + latent] = z.astype(out_ref.dtype)


@functools.partial(jax.jit, static_argnames=("block_batch",))
def uwan_forward(x, params, block_batch=1024):
    """Runs the UWAN forward pass; returns (y, z) like the PyTorch module."""
    n, d_in = x.shape
    we1, be1, we2, be2, wd1, bd1, wd2, bd2 = params
    hidden = we1.shape[1]
    latent = we2.shape[1]
    d_out = wd2.shape[1]

    # Batch tile: clamp to the (16-aligned) batch so tiny batches do not pad
    # all the way up to block_batch.  16-row alignment satisfies bf16 tiling.
    bb = max(16, min(_round_up(block_batch, 16), _round_up(n, 16)))
    n_pad = _round_up(n, bb)
    grid = (n_pad // bb,)

    out_width = _round_up(d_out + latent, 128)   # lane-dense output slab

    # bf16 I/O; accumulation stays f32 inside the kernel.
    x_bf = x.astype(jnp.bfloat16)
    if n_pad != n:
        x_bf = jnp.pad(x_bf, ((0, n_pad - n), (0, 0)))
    we1b = we1.astype(jnp.bfloat16)
    we2b = we2.astype(jnp.bfloat16)
    wd1b = wd1.astype(jnp.bfloat16)
    wd2b = wd2.astype(jnp.bfloat16)

    def resident(shape):
        # Full-array block with a fixed block index: stays resident in VMEM
        # across the whole batch-tiled grid (no per-step re-fetch).
        return pl.BlockSpec(shape, lambda i: (0, 0))

    out = pl.pallas_call(
        _uwan_kernel,
        out_shape=jax.ShapeDtypeStruct((n_pad, out_width), jnp.bfloat16),
        grid=grid,
        in_specs=[
            pl.BlockSpec((bb, d_in), lambda i: (i, 0)),   # x (batch-tiled)
            resident((d_in, hidden)),    # We1
            resident((1, hidden)),       # be1  (f32)
            resident((hidden, latent)),  # We2
            resident((1, latent)),       # be2  (f32)
            resident((latent, hidden)),  # Wd1
            resident((1, hidden)),       # bd1  (f32)
            resident((hidden, d_out)),   # Wd2
            resident((1, d_out)),        # bd2  (f32)
        ],
        out_specs=pl.BlockSpec((bb, out_width), lambda i: (i, 0)),
        compiler_params=pltpu.CompilerParams(
            dimension_semantics=("parallel",)),
    )(x_bf, we1b, be1, we2b, be2, wd1b, bd1, wd2b, bd2)

    out = out[:n]
    y = out[:, :d_out].astype(jnp.float32)
    z = out[:, d_out:d_out + latent].astype(jnp.float32)
    return y, z


def init_params(key, input_dim, hidden_dim, latent_dim):
    ks = jax.random.split(key, 8)
    scale = 0.1
    we1 = scale * jax.random.normal(ks[0], (input_dim, hidden_dim), jnp.float32)
    be1 = scale * jax.random.normal(ks[1], (1, hidden_dim), jnp.float32)
    we2 = scale * jax.random.normal(ks[2], (hidden_dim, latent_dim), jnp.float32)
    be2 = scale * jax.random.normal(ks[3], (1, latent_dim), jnp.float32)
    wd1 = scale * jax.random.normal(ks[4], (latent_dim, hidden_dim), jnp.float32)
    bd1 = scale * jax.random.normal(ks[5], (1, hidden_dim), jnp.float32)
    wd2 = scale * jax.random.normal(ks[6], (hidden_dim, input_dim), jnp.float32)
    bd2 = scale * jax.random.normal(ks[7], (1, input_dim), jnp.float32)
    return (we1, be1, we2, be2, wd1, bd1, wd2, bd2)


def _reference_forward(x, params):
    we1, be1, we2, be2, wd1, bd1, wd2, bd2 = params
    h1 = jnp.tanh(x @ we1 + be1)
    z = h1 @ we2 + be2
    h2 = jnp.tanh(z @ wd1 + bd1)
    y = jax.nn.sigmoid(h2 @ wd2 + bd2)
    return y, z


if __name__ == "__main__":
    key = jax.random.PRNGKey(0)
    k_x, k_p = jax.random.split(key)

    batch = 300          # intentionally NOT a multiple of the block size
    input_dim = 32
    hidden_dim = 16
    latent_dim = 8

    # BCE reconstruction target implies inputs in [0, 1].
    x = jax.random.uniform(k_x, (batch, input_dim), jnp.float32)
    params = init_params(k_p, input_dim, hidden_dim, latent_dim)

    # Small block here to exercise the multi-step grid and the padded tail
    # tile; production batches should use the default (512-2048, sweep).
    y, z = uwan_forward(x, params, block_batch=128)
    jax.block_until_ready((y, z))

    y_ref, z_ref = _reference_forward(x, params)
    assert y.shape == (batch, input_dim) and z.shape == (batch, latent_dim)
    # bf16 I/O (inputs/weights/outputs) => looser tolerance than pure f32;
    # accumulation and activations stay f32 so the error remains small.
    assert jnp.allclose(y, y_ref, atol=2e-2, rtol=2e-2), \
        float(jnp.max(jnp.abs(y - y_ref)))
    assert jnp.allclose(z, z_ref, atol=2e-2, rtol=2e-2), \
        float(jnp.max(jnp.abs(z - z_ref)))

    print("KERNEL_OK")
</pallas_src>

<mosaic_0001>
module attributes {stable_mosaic.version = 11 : i64} {
  func.func @_uwan_kernel(%arg0: i32, %arg1: memref<128x32xbf16, #tpu.memory_space<vmem>>, %arg2: memref<32x16xbf16, #tpu.memory_space<vmem>>, %arg3: memref<1x16xf32, #tpu.memory_space<vmem>>, %arg4: memref<16x8xbf16, #tpu.memory_space<vmem>>, %arg5: memref<1x8xf32, #tpu.memory_space<vmem>>, %arg6: memref<8x16xbf16, #tpu.memory_space<vmem>>, %arg7: memref<1x16xf32, #tpu.memory_space<vmem>>, %arg8: memref<16x32xbf16, #tpu.memory_space<vmem>>, %arg9: memref<1x32xf32, #tpu.memory_space<vmem>>, %arg10: memref<128x128xbf16, #tpu.memory_space<vmem>>) attributes {dimension_semantics = [#tpu.dimension_semantics<parallel>], iteration_bounds = array<i64: 3>, scalar_prefetch = 0 : i64, scratch_operands = 0 : i64, tpu.core_type = #tpu.core_type<tc>, window_params = [{transform_indices = @transform_0, window_bounds = array<i64: 128, 32>}, {pipeline_mode = #tpu.pipeline_mode<synchronous>, transform_indices = @transform_1, window_bounds = array<i64: 32, 16>}, {pipeline_mode = #tpu.pipeline_mode<synchronous>, transform_indices = @transform_2, window_bounds = array<i64: 1, 16>}, {pipeline_mode = #tpu.pipeline_mode<synchronous>, transform_indices = @transform_3, window_bounds = array<i64: 16, 8>}, {pipeline_mode = #tpu.pipeline_mode<synchronous>, transform_indices = @transform_4, window_bounds = array<i64: 1, 8>}, {pipeline_mode = #tpu.pipeline_mode<synchronous>, transform_indices = @transform_5, window_bounds = array<i64: 8, 16>}, {pipeline_mode = #tpu.pipeline_mode<synchronous>, transform_indices = @transform_6, window_bounds = array<i64: 1, 16>}, {pipeline_mode = #tpu.pipeline_mode<synchronous>, transform_indices = @transform_7, window_bounds = array<i64: 16, 32>}, {pipeline_mode = #tpu.pipeline_mode<synchronous>, transform_indices = @transform_8, window_bounds = array<i64: 1, 32>}, {transform_indices = @transform_9, window_bounds = array<i64: 128, 128>}]} {
    %c0 = arith.constant 0 : index
    %c0_0 = arith.constant 0 : index
    %0 = vector.load %arg1[%c0, %c0_0] : memref<128x32xbf16, #tpu.memory_space<vmem>>, vector<128x32xbf16>
    %c0_1 = arith.constant 0 : index
    %c0_2 = arith.constant 0 : index
    %1 = vector.load %arg2[%c0_1, %c0_2] : memref<32x16xbf16, #tpu.memory_space<vmem>>, vector<32x16xbf16>
    %cst = arith.constant dense<0.000000e+00> : vector<128x16xf32>
    %2 = tpu.matmul %0, %1, %cst {dimension_numbers = #tpu.dot_dimension_numbers<[1], [0], [0], [1], [0, 0, 1, 1], [], []>} : vector<128x32xbf16>, vector<32x16xbf16>, vector<128x16xf32> -> vector<128x16xf32>
    %c0_3 = arith.constant 0 : index
    %c0_4 = arith.constant 0 : index
    %3 = vector.load %arg3[%c0_3, %c0_4] : memref<1x16xf32, #tpu.memory_space<vmem>>, vector<1x16xf32>
    %4 = vector.broadcast %3 : vector<1x16xf32> to vector<128x16xf32>
    %5 = arith.addf %2, %4 : vector<128x16xf32>
    %6 = math.tanh %5 : vector<128x16xf32>
    %7 = arith.truncf %6 : vector<128x16xf32> to vector<128x16xbf16>
    %c0_5 = arith.constant 0 : index
    %c0_6 = arith.constant 0 : index
    %8 = vector.load %arg4[%c0_5, %c0_6] : memref<16x8xbf16, #tpu.memory_space<vmem>>, vector<16x8xbf16>
    %cst_7 = arith.constant dense<0.000000e+00> : vector<128x8xf32>
    %9 = tpu.matmul %7, %8, %cst_7 {dimension_numbers = #tpu.dot_dimension_numbers<[1], [0], [0], [1], [0, 0, 1, 1], [], []>} : vector<128x16xbf16>, vector<16x8xbf16>, vector<128x8xf32> -> vector<128x8xf32>
    %c0_8 = arith.constant 0 : index
    %c0_9 = arith.constant 0 : index
    %10 = vector.load %arg5[%c0_8, %c0_9] : memref<1x8xf32, #tpu.memory_space<vmem>>, vector<1x8xf32>
    %11 = vector.broadcast %10 : vector<1x8xf32> to vector<128x8xf32>
    %12 = arith.addf %9, %11 : vector<128x8xf32>
    %13 = arith.truncf %12 : vector<128x8xf32> to vector<128x8xbf16>
    %c0_10 = arith.constant 0 : index
    %c0_11 = arith.constant 0 : index
    %14 = vector.load %arg6[%c0_10, %c0_11] : memref<8x16xbf16, #tpu.memory_space<vmem>>, vector<8x16xbf16>
    %cst_12 = arith.constant dense<0.000000e+00> : vector<128x16xf32>
    %15 = tpu.matmul %13, %14, %cst_12 {dimension_numbers = #tpu.dot_dimension_numbers<[1], [0], [0], [1], [0, 0, 1, 1], [], []>} : vector<128x8xbf16>, vector<8x16xbf16>, vector<128x16xf32> -> vector<128x16xf32>
    %c0_13 = arith.constant 0 : index
    %c0_14 = arith.constant 0 : index
    %16 = vector.load %arg7[%c0_13, %c0_14] : memref<1x16xf32, #tpu.memory_space<vmem>>, vector<1x16xf32>
    %17 = vector.broadcast %16 : vector<1x16xf32> to vector<128x16xf32>
    %18 = arith.addf %15, %17 : vector<128x16xf32>
    %19 = math.tanh %18 : vector<128x16xf32>
    %20 = arith.truncf %19 : vector<128x16xf32> to vector<128x16xbf16>
    %c0_15 = arith.constant 0 : index
    %c0_16 = arith.constant 0 : index
    %21 = vector.load %arg8[%c0_15, %c0_16] : memref<16x32xbf16, #tpu.memory_space<vmem>>, vector<16x32xbf16>
    %cst_17 = arith.constant dense<0.000000e+00> : vector<128x32xf32>
    %22 = tpu.matmul %20, %21, %cst_17 {dimension_numbers = #tpu.dot_dimension_numbers<[1], [0], [0], [1], [0, 0, 1, 1], [], []>} : vector<128x16xbf16>, vector<16x32xbf16>, vector<128x32xf32> -> vector<128x32xf32>
    %c0_18 = arith.constant 0 : index
    %c0_19 = arith.constant 0 : index
    %23 = vector.load %arg9[%c0_18, %c0_19] : memref<1x32xf32, #tpu.memory_space<vmem>>, vector<1x32xf32>
    %24 = vector.broadcast %23 : vector<1x32xf32> to vector<128x32xf32>
    %25 = arith.addf %22, %24 : vector<128x32xf32>
    %26 = arith.negf %25 : vector<128x32xf32>
    %27 = math.exp %26 : vector<128x32xf32>
    %cst_20 = arith.constant 1.000000e+00 : f32
    %28 = vector.broadcast %cst_20 : f32 to vector<128x32xf32>
    %29 = arith.addf %28, %27 : vector<128x32xf32>
    %30 = arith.divf %28, %29 : vector<128x32xf32>
    %cst_21 = arith.constant 0.000000e+00 : bf16
    %31 = vector.broadcast %cst_21 : bf16 to vector<128x128xbf16>
    %c0_22 = arith.constant 0 : index
    %c0_23 = arith.constant 0 : index
    %32 = vector.load %arg10[%c0_22, %c0_23] : memref<128x128xbf16, #tpu.memory_space<vmem>>, vector<128x128xbf16>
    tpu.vector_store %arg10[%c0_22, %c0_23], %31 {strides = array<i32>} : memref<128x128xbf16, #tpu.memory_space<vmem>>, vector<128x128xbf16>,
    %33 = arith.truncf %30 : vector<128x32xf32> to vector<128x32xbf16>
    %c0_24 = arith.constant 0 : index
    %c0_25 = arith.constant 0 : index
    %34 = vector.load %arg10[%c0_24, %c0_25] : memref<128x128xbf16, #tpu.memory_space<vmem>>, vector<128x32xbf16>
    tpu.vector_store %arg10[%c0_24, %c0_25], %33 {strides = array<i32>} : memref<128x128xbf16, #tpu.memory_space<vmem>>, vector<128x32xbf16>,
    %35 = arith.truncf %12 : vector<128x8xf32> to vector<128x8xbf16>
    %c0_26 = arith.constant 0 : index
    %c32 = arith.constant 32 : index
    %36 = vector.load %arg10[%c0_26, %c32] : memref<128x128xbf16, #tpu.memory_space<vmem>>, vector<128x8xbf16>
    tpu.vector_store %arg10[%c0_26, %c32], %35 {strides = array<i32>} : memref<128x128xbf16, #tpu.memory_space<vmem>>, vector<128x8xbf16>,
    return
  }
  func.func @transform_0(%arg0: i32) -> (i32, i32) {
    %c0_i32 = arith.constant 0 : i32
    %c0_i32_0 = arith.constant 0 : i32
    return %arg0, %c0_i32 : i32, i32
  }
  func.func @transform_1(%arg0: i32) -> (i32, i32) {
    %c0_i32 = arith.constant 0 : i32
    %c0_i32_0 = arith.constant 0 : i32
    %c0_i32_1 = arith.constant 0 : i32
    return %c0_i32, %c0_i32_0 : i32, i32
  }
  func.func @transform_2(%arg0: i32) -> (i32, i32) {
    %c0_i32 = arith.constant 0 : i32
    %c0_i32_0 = arith.constant 0 : i32
    %c0_i32_1 = arith.constant 0 : i32
    return %c0_i32, %c0_i32_0 : i32, i32
  }
  func.func @transform_3(%arg0: i32) -> (i32, i32) {
    %c0_i32 = arith.constant 0 : i32
    %c0_i32_0 = arith.constant 0 : i32
    %c0_i32_1 = arith.constant 0 : i32
    return %c0_i32, %c0_i32_0 : i32, i32
  }
  func.func @transform_4(%arg0: i32) -> (i32, i32) {
    %c0_i32 = arith.constant 0 : i32
    %c0_i32_0 = arith.constant 0 : i32
    %c0_i32_1 = arith.constant 0 : i32
    return %c0_i32, %c0_i32_0 : i32, i32
  }
  func.func @transform_5(%arg0: i32) -> (i32, i32) {
    %c0_i32 = arith.constant 0 : i32
    %c0_i32_0 = arith.constant 0 : i32
    %c0_i32_1 = arith.constant 0 : i32
    return %c0_i32, %c0_i32_0 : i32, i32
  }
  func.func @transform_6(%arg0: i32) -> (i32, i32) {
    %c0_i32 = arith.constant 0 : i32
    %c0_i32_0 = arith.constant 0 : i32
    %c0_i32_1 = arith.constant 0 : i32
    return %c0_i32, %c0_i32_0 : i32, i32
  }
  func.func @transform_7(%arg0: i32) -> (i32, i32) {
    %c0_i32 = arith.constant 0 : i32
    %c0_i32_0 = arith.constant 0 : i32
    %c0_i32_1 = arith.constant 0 : i32
    return %c0_i32, %c0_i32_0 : i32, i32
  }
  func.func @transform_8(%arg0: i32) -> (i32, i32) {
    %c0_i32 = arith.constant 0 : i32
    %c0_i32_0 = arith.constant 0 : i32
    %c0_i32_1 = arith.constant 0 : i32
    return %c0_i32, %c0_i32_0 : i32, i32
  }
  func.func @transform_9(%arg0: i32) -> (i32, i32) {
    %c0_i32 = arith.constant 0 : i32
    %c0_i32_0 = arith.constant 0 : i32
    return %arg0, %c0_i32 : i32, i32
  }
}

</mosaic_0001>

<llo_original>
// kernel: uwan_forward.1
$region0: #{uwan_forward.1}
  #allocation0 [shape = 'u32[]', space=smem, size = 0x4, offset = 0x4, fixed_abs, tag = 'smem constant byte address 0x4 - core index']
  #allocation1 [shape = 'u32[144,128]{1,0:T(1,128)}', space=vmem, size = 0x12000, scoped, tag = 'internal scratch']
  %s0 = inlined_call_operand.vmem [shape: bf16[384,32], index: 0, kind: input, shape index: {}]
  %s1 = inlined_call_operand.vmem [shape: bf16[32,16], index: 1, kind: input, shape index: {}]
  %s2 = inlined_call_operand.vmem [shape: f32[1,16], index: 2, kind: input, shape index: {}]
  %s3 = inlined_call_operand.vmem [shape: bf16[16,8], index: 3, kind: input, shape index: {}]
  %s4 = inlined_call_operand.vmem [shape: f32[1,8], index: 4, kind: input, shape index: {}]
  %s5 = inlined_call_operand.vmem [shape: bf16[8,16], index: 5, kind: input, shape index: {}]
  %s6 = inlined_call_operand.vmem [shape: f32[1,16], index: 6, kind: input, shape index: {}]
  %s7 = inlined_call_operand.vmem [shape: bf16[16,32], index: 7, kind: input, shape index: {}]
  %s8 = inlined_call_operand.vmem [shape: f32[1,32], index: 8, kind: input, shape index: {}]
  %s9 = inlined_call_operand.vmem [shape: bf16[384,128], index: 9, kind: output, shape index: {}]
  %s10 = sld [smem:[#allocation0]]
  $region69: #{uwan_forward.1} parent=0
    _
  %s12 = ssub.s32 1, %s10
  %s13 = scalar_select 0, %s12, %s10
  loop: start=0, step=1, limit=5
  $region2: #{uwan_forward.1} parent=0 // loop_pre_header
    _
  $region3: #{uwan_forward.1} parent=0 // loop_header
    %s15 = sphi 0, %s19
    %p16 = scmp.ge.s32.totalorder %s15, 5
    %s25 = sphi 0, %s27
    %s28 = sphi 0, %s25
    %s29 = sphi 0, %s28
    %s45 = sphi 0, %s29
    %s49 = sphi 0, %s49
    %s51 = sphi 0, %s49
    %s52 = sphi 0, %s51
    %s66 = sphi 0, %s52
    %s70 = sphi 0, %s70
    %s72 = sphi 0, %s70
    %s73 = sphi 0, %s72
    %s87 = sphi 0, %s73
    %s91 = sphi 0, %s91
    %s93 = sphi 0, %s91
    %s94 = sphi 0, %s93
    %s108 = sphi 0, %s94
    %s112 = sphi 0, %s112
    %s114 = sphi 0, %s112
    %s115 = sphi 0, %s114
    %s129 = sphi 0, %s115
    %s133 = sphi 0, %s133
    %s135 = sphi 0, %s133
    %s136 = sphi 0, %s135
    %s150 = sphi 0, %s136
    %s154 = sphi 0, %s154
    %s156 = sphi 0, %s154
    %s157 = sphi 0, %s156
    %s171 = sphi 0, %s157
    %s175 = sphi 0, %s175
    %s177 = sphi 0, %s175
    %s178 = sphi 0, %s177
    %s192 = sphi 0, %s178
    %s196 = sphi 0, %s196
    %s198 = sphi 0, %s196
    %s199 = sphi 0, %s198
    %s213 = sphi 0, %s199
    %s219 = sphi 0, %s221
    %s222 = sphi 0, %s219
    %s223 = sphi 0, %s222
    %s239 = sphi 0, %s223
  $region4: #{uwan_forward.1} parent=0 // loop_header_branch
    %18 = sbr.rel (%p16) target = $region8
  $region5: #{uwan_forward.1} parent=0 // loop_body
    %s20 = ssub.s32 %s15, 1
    %s21 = ssub.s32 %s15, 2
    %s22 = sadd.s32 %s15, 1
    %s23 = ssub.s32 %s15, %s22
    %p24 = scmp.eq.s32.totalorder %s23, 0
    %s26 = sadd.s32 %s25, 1
    %s27 = scalar_select %p24, %s25, %s26
    %p30 = pneg %p24
    %p31 = scmp.eq.s32.totalorder %s15, 2
    %p32 = por %p30, %p31
    %p33 = scmp.ne.s32.totalorder %s25, %s28
    %p34 = scmp.eq.s32.totalorder %s15, 0
    %p35 = por %p33, %p34
    %p36 = scmp.ne.s32.totalorder %s25, %s28
    %p37 = scmp.eq.s32.totalorder %s20, 2
    %p38 = por %p36, %p37
    %p39 = scmp.ne.s32.totalorder %s28, %s29
    %p40 = scmp.eq.s32.totalorder %s20, 0
    %p41 = por %p39, %p40
    %p42 = scmp.ne.s32.totalorder %s28, %s29
    %p43 = scmp.eq.s32.totalorder %s21, 2
    %p44 = por %p42, %p43
    %p46 = scmp.ne.s32.totalorder %s29, %s45
    %p47 = scmp.eq.s32.totalorder %s21, 0
    %p48 = por %p46, %p47
    %s50 = sadd.s32 %s49, 1
    %p53 = scmp.eq.s32.totalorder %s15, 2
    %p54 = scmp.ne.s32.totalorder %s49, %s51
    %p55 = scmp.eq.s32.totalorder %s15, 0
    %p56 = por %p54, %p55
    %p57 = scmp.ne.s32.totalorder %s49, %s51
    %p58 = scmp.eq.s32.totalorder %s20, 2
    %p59 = por %p57, %p58
    %p60 = scmp.ne.s32.totalorder %s51, %s52
    %p61 = scmp.eq.s32.totalorder %s20, 0
    %p62 = por %p60, %p61
    %p63 = scmp.ne.s32.totalorder %s51, %s52
    %p64 = scmp.eq.s32.totalorder %s21, 2
    %p65 = por %p63, %p64
    %p67 = scmp.ne.s32.totalorder %s52, %s66
    %p68 = scmp.eq.s32.totalorder %s21, 0
    %p69 = por %p67, %p68
    %s71 = sadd.s32 %s70, 1
    %p74 = scmp.eq.s32.totalorder %s15, 2
    %p75 = scmp.ne.s32.totalorder %s70, %s72
    %p76 = scmp.eq.s32.totalorder %s15, 0
    %p77 = por %p75, %p76
    %p78 = scmp.ne.s32.totalorder %s70, %s72
    %p79 = scmp.eq.s32.totalorder %s20, 2
    %p80 = por %p78, %p79
    %p81 = scmp.ne.s32.totalorder %s72, %s73
    %p82 = scmp.eq.s32.totalorder %s20, 0
    %p83 = por %p81, %p82
    %p84 = scmp.ne.s32.totalorder %s72, %s73
    %p85 = scmp.eq.s32.totalorder %s21, 2
    %p86 = por %p84, %p85
    %p88 = scmp.ne.s32.totalorder %s73, %s87
    %p89 = scmp.eq.s32.totalorder %s21, 0
    %p90 = por %p88, %p89
    %s92 = sadd.s32 %s91, 1
    %p95 = scmp.eq.s32.totalorder %s15, 2
    %p96 = scmp.ne.s32.totalorder %s91, %s93
    %p97 = scmp.eq.s32.totalorder %s15, 0
    %p98 = por %p96, %p97
    %p99 = scmp.ne.s32.totalorder %s91, %s93
    %p100 = scmp.eq.s32.totalorder %s20, 2
    %p101 = por %p99, %p100
    %p102 = scmp.ne.s32.totalorder %s93, %s94
    %p103 = scmp.eq.s32.totalorder %s20, 0
    %p104 = por %p102, %p103
    %p105 = scmp.ne.s32.totalorder %s93, %s94
    %p106 = scmp.eq.s32.totalorder %s21, 2
    %p107 = por %p105, %p106
    %p109 = scmp.ne.s32.totalorder %s94, %s108
    %p110 = scmp.eq.s32.totalorder %s21, 0
    %p111 = por %p109, %p110
    %s113 = sadd.s32 %s112, 1
    %p116 = scmp.eq.s32.totalorder %s15, 2
    %p117 = scmp.ne.s32.totalorder %s112, %s114
    %p118 = scmp.eq.s32.totalorder %s15, 0
    %p119 = por %p117, %p118
    %p120 = scmp.ne.s32.totalorder %s112, %s114
    %p121 = scmp.eq.s32.totalorder %s20, 2
    %p122 = por %p120, %p121
    %p123 = scmp.ne.s32.totalorder %s114, %s115
    %p124 = scmp.eq.s32.totalorder %s20, 0
    %p125 = por %p123, %p124
    %p126 = scmp.ne.s32.totalorder %s114, %s115
    %p127 = scmp.eq.s32.totalorder %s21, 2
    %p128 = por %p126, %p127
    %p130 = scmp.ne.s32.totalorder %s115, %s129
    %p131 = scmp.eq.s32.totalorder %s21, 0
    %p132 = por %p130, %p131
    %s134 = sadd.s32 %s133, 1
    %p137 = scmp.eq.s32.totalorder %s15, 2
    %p138 = scmp.ne.s32.totalorder %s133, %s135
    %p139 = scmp.eq.s32.totalorder %s15, 0
    %p140 = por %p138, %p139
    %p141 = scmp.ne.s32.totalorder %s133, %s135
    %p142 = scmp.eq.s32.totalorder %s20, 2
    %p143 = por %p141, %p142
    %p144 = scmp.ne.s32.totalorder %s135, %s136
    %p145 = scmp.eq.s32.totalorder %s20, 0
    %p146 = por %p144, %p145
    %p147 = scmp.ne.s32.totalorder %s135, %s136
    %p148 = scmp.eq.s32.totalorder %s21, 2
    %p149 = por %p147, %p148
    %p151 = scmp.ne.s32.totalorder %s136, %s150
    %p152 = scmp.eq.s32.totalorder %s21, 0
    %p153 = por %p151, %p152
    %s155 = sadd.s32 %s154, 1
    %p158 = scmp.eq.s32.totalorder %s15, 2
    %p159 = scmp.ne.s32.totalorder %s154, %s156
    %p160 = scmp.eq.s32.totalorder %s15, 0
    %p161 = por %p159, %p160
    %p162 = scmp.ne.s32.totalorder %s154, %s156
    %p163 = scmp.eq.s32.totalorder %s20, 2
    %p164 = por %p162, %p163
    %p165 = scmp.ne.s32.totalorder %s156, %s157
    %p166 = scmp.eq.s32.totalorder %s20, 0
    %p167 = por %p165, %p166
    %p168 = scmp.ne.s32.totalorder %s156, %s157
    %p169 = scmp.eq.s32.totalorder %s21, 2
    %p170 = por %p168, %p169
    %p172 = scmp.ne.s32.totalorder %s157, %s171
    %p173 = scmp.eq.s32.totalorder %s21, 0
    %p174 = por %p172, %p173
    %s176 = sadd.s32 %s175, 1
    %p179 = scmp.eq.s32.totalorder %s15, 2
    %p180 = scmp.ne.s32.totalorder %s175, %s177
    %p181 = scmp.eq.s32.totalorder %s15, 0
    %p182 = por %p180, %p181
    %p183 = scmp.ne.s32.totalorder %s175, %s177
    %p184 = scmp.eq.s32.totalorder %s20, 2
    %p185 = por %p183, %p184
    %p186 = scmp.ne.s32.totalorder %s177, %s178
    %p187 = scmp.eq.s32.totalorder %s20, 0
    %p188 = por %p186, %p187
    %p189 = scmp.ne.s32.totalorder %s177, %s178
    %p190 = scmp.eq.s32.totalorder %s21, 2
    %p191 = por %p189, %p190
    %p193 = scmp.ne.s32.totalorder %s178, %s192
    %p194 = scmp.eq.s32.totalorder %s21, 0
    %p195 = por %p193, %p194
    %s197 = sadd.s32 %s196, 1
    %p200 = scmp.eq.s32.totalorder %s15, 2
    %p201 = scmp.ne.s32.totalorder %s196, %s198
    %p202 = scmp.eq.s32.totalorder %s15, 0
    %p203 = por %p201, %p202
    %p204 = scmp.ne.s32.totalorder %s196, %s198
    %p205 = scmp.eq.s32.totalorder %s20, 2
    %p206 = por %p204, %p205
    %p207 = scmp.ne.s32.totalorder %s198, %s199
    %p208 = scmp.eq.s32.totalorder %s20, 0
    %p209 = por %p207, %p208
    %p210 = scmp.ne.s32.totalorder %s198, %s199
    %p211 = scmp.eq.s32.totalorder %s21, 2
    %p212 = por %p210, %p211
    %p214 = scmp.ne.s32.totalorder %s199, %s213
    %p215 = scmp.eq.s32.totalorder %s21, 0
    %p216 = por %p214, %p215
    %s217 = ssub.s32 %s15, %s22
    %p218 = scmp.eq.s32.totalorder %s217, 0
    %s220 = sadd.s32 %s219, 1
    %s221 = scalar_select %p218, %s219, %s220
    %p224 = pneg %p218
    %p225 = scmp.eq.s32.totalorder %s15, 2
    %p226 = por %p224, %p225
    %p227 = scmp.ne.s32.totalorder %s219, %s222
    %p228 = scmp.eq.s32.totalorder %s15, 0
    %p229 = por %p227, %p228
    %p230 = scmp.ne.s32.totalorder %s219, %s222
    %p231 = scmp.eq.s32.totalorder %s20, 2
    %p232 = por %p230, %p231
    %p233 = scmp.ne.s32.totalorder %s222, %s223
    %p234 = scmp.eq.s32.totalorder %s20, 0
    %p235 = por %p233, %p234
    %p236 = scmp.ne.s32.totalorder %s222, %s223
    %p237 = scmp.eq.s32.totalorder %s21, 2
    %p238 = por %p236, %p237
    %p240 = scmp.ne.s32.totalorder %s223, %s239
    %p241 = scmp.eq.s32.totalorder %s21, 0
    %p242 = por %p240, %p241
    %p243 = scmp.le.s32.totalorder 1, %s15
    %p244 = scmp.lt.s32.totalorder %s15, 4
    %p245 = pnand %p243, %p244
    %p246 = pneg %p245
    // Predicated region
    $region9: #{uwan_forward.1} parent=5 // pred_check
      _
    $region10: #{uwan_forward.1} parent=5 // pred_check_branch
      %248 = sbr.rel (%p245) target = $region12
    $region11: #{uwan_forward.1} parent=5 // pred_region
      %s249 = ssub.s32 %s15, 1
      // Predicated region
      $region13: #{uwan_forward.1} parent=11 // pred_check
        %p250 = pneg %p62
      $region14: #{uwan_forward.1} parent=11 // pred_check_branch
        %252 = sbr.rel (%p250) target = $region16
      $region15: #{uwan_forward.1} parent=11 // pred_region
        _
      $region16: #{uwan_forward.1} parent=11 // pred_fallthru
        _
      // Predicated region
      $region17: #{uwan_forward.1} parent=11 // pred_check
        %p253 = pneg %p83
      $region18: #{uwan_forward.1} parent=11 // pred_check_branch
        %255 = sbr.rel (%p253) target = $region20
      $region19: #{uwan_forward.1} parent=11 // pred_region
        _
      $region20: #{uwan_forward.1} parent=11 // pred_fallthru
        _
      // Predicated region
      $region21: #{uwan_forward.1} parent=11 // pred_check
        %p256 = pneg %p104
      $region22: #{uwan_forward.1} parent=11 // pred_check_branch
        %258 = sbr.rel (%p256) target = $region24
      $region23: #{uwan_forward.1} parent=11 // pred_region
        _
      $region24: #{uwan_forward.1} parent=11 // pred_fallthru
        _
      // Predicated region
      $region25: #{uwan_forward.1} parent=11 // pred_check
        %p259 = pneg %p125
      $region26: #{uwan_forward.1} parent=11 // pred_check_branch
        %261 = sbr.rel (%p259) target = $region28
      $region27: #{uwan_forward.1} parent=11 // pred_region
        _
      $region28: #{uwan_forward.1} parent=11 // pred_fallthru
        _
      // Predicated region
      $region29: #{uwan_forward.1} parent=11 // pred_check
        %p262 = pneg %p146
      $region30: #{uwan_forward.1} parent=11 // pred_check_branch
        %264 = sbr.rel (%p262) target = $region32
      $region31: #{uwan_forward.1} parent=11 // pred_region
        _
      $region32: #{uwan_forward.1} parent=11 // pred_fallthru
        _
      // Predicated region
      $region33: #{uwan_forward.1} parent=11 // pred_check
        %p265 = pneg %p167
      $region34: #{uwan_forward.1} parent=11 // pred_check_branch
        %267 = sbr.rel (%p265) target = $region36
      $region35: #{uwan_forward.1} parent=11 // pred_region
        _
      $region36: #{uwan_forward.1} parent=11 // pred_fallthru
        _
      // Predicated region
      $region37: #{uwan_forward.1} parent=11 // pred_check
        %p268 = pneg %p188
      $region38: #{uwan_forward.1} parent=11 // pred_check_branch
        %270 = sbr.rel (%p268) target = $region40
      $region39: #{uwan_forward.1} parent=11 // pred_region
        _
      $region40: #{uwan_forward.1} parent=11 // pred_fallthru
        _
      // Predicated region
      $region41: #{uwan_forward.1} parent=11 // pred_check
        %p271 = pneg %p209
      $region42: #{uwan_forward.1} parent=11 // pred_check_branch
        %273 = sbr.rel (%p271) target = $region44
      $region43: #{uwan_forward.1} parent=11 // pred_region
        _
      $region44: #{uwan_forward.1} parent=11 // pred_fallthru
        _
    $region12: #{uwan_forward.1} parent=5 // pred_fallthru
      _
    %p274 = scmp.lt.s32.totalorder %s15, 3
    // Predicated region
    $region45: #{uwan_forward.1} parent=5 // pred_check
      %p275 = pneg %p274
    $region46: #{uwan_forward.1} parent=5 // pred_check_branch
      %277 = sbr.rel (%p275) target = $region48
    $region47: #{uwan_forward.1} parent=5 // pred_region
      // Predicated region
      $region49: #{uwan_forward.1} parent=47 // pred_check
        %p278 = pneg %p35
      $region50: #{uwan_forward.1} parent=47 // pred_check_branch
        %280 = sbr.rel (%p278) target = $region52
      $region51: #{uwan_forward.1} parent=47 // pred_region
        %s281 = smul.u32 16, %s15
        %p282 = scmp.lt.s32.totalorder %s281, 47
        %s283 = scalar_select %p282, %s281, 47
        %s284 = smul.addr %s283, 4
        %s285 = scalar_lea.vmem %s0, %s284
        %s286 = smul.u32 16, %s15
      $region52: #{uwan_forward.1} parent=47 // pred_fallthru
        _
    $region48: #{uwan_forward.1} parent=5 // pred_fallthru
      _
    %p287 = scmp.le.s32.totalorder 1, %s15
    %p288 = scmp.lt.s32.totalorder %s15, 4
    %p289 = pnand %p287, %p288
    %p290 = pneg %p289
    // Predicated region
    $region53: #{uwan_forward.1} parent=5 // pred_check
      _
    $region54: #{uwan_forward.1} parent=5 // pred_check_branch
      %292 = sbr.rel (%p289) target = $region56
    $region55: #{uwan_forward.1} parent=5 // pred_region
      %s293 = ssub.s32 %s15, 1
      %s294 = smul.u32 16, %s20
      %p295 = scmp.lt.s32.totalorder %s294, 47
      %s296 = scalar_select %p295, %s294, 47
      %s297 = smul.addr %s296, 4
      %s298 = scalar_lea.vmem %s0, %s297
      %p299 = pneg %p41
      %p300 = pneg %p38
      %p301 = pneg %p62
      %p302 = pneg %p59
      %p303 = pneg %p83
      %p304 = pneg %p80
      %p305 = pneg %p104
      %p306 = pneg %p101
      %p307 = pneg %p125
      %p308 = pneg %p122
      %p309 = pneg %p146
      %p310 = pneg %p143
      %p311 = pneg %p167
      %p312 = pneg %p164
      %p313 = pneg %p188
      %p314 = pneg %p185
      %p315 = pneg %p209
      %p316 = pneg %p206
      %p317 = pneg %p235
      %p318 = pneg %p232
      %s319 = smul.u32 16, %s20
      %p320 = scmp.lt.s32.totalorder %s319, 47
      %s321 = scalar_select %p320, %s319, 47
      %s322 = smul.addr %s321, 4
      %s323 = scalar_lea.vmem %s9, %s322
      %s324 = smul.u32 16, %s20
      %p325 = scmp.lt.s32.totalorder %s324, 47
      %s326 = scalar_select %p325, %s324, 47
      %s327 = smul.addr %s326, 4
      %s328 = scalar_lea.vmem %s0, %s327
      %s329 = smul.u32 16, %s20
      %s330 = smul.u32 16, %s20
      %p331 = scmp.lt.s32.totalorder %s330, 47
      %s332 = scalar_select %p331, %s330, 47
      %s333 = smul.addr %s332, 4
      %s334 = scalar_lea.vmem %s9, %s333
      %s335 = smul.u32 16, %s20
      %v337 = vld [vmem:[%s328] sm:$0xf]
      %v338 = vld [vmem:[%s328 + $0x4] sm:$0xf]
      %v339 = vld [vmem:[%s328 + $0x8] sm:$0xf]
      %v340 = vld [vmem:[%s328 + $0xc] sm:$0xf]
      %v341 = vld [vmem:[%s328 + $0x10] sm:$0xf]
      %v342 = vld [vmem:[%s328 + $0x14] sm:$0xf]
      %v343 = vld [vmem:[%s328 + $0x18] sm:$0xf]
      %v344 = vld [vmem:[%s328 + $0x1c] sm:$0xf]
      %v345 = vld [vmem:[%s328 + $0x20] sm:$0xf]
      %v346 = vld [vmem:[%s328 + $0x24] sm:$0xf]
      %v347 = vld [vmem:[%s328 + $0x28] sm:$0xf]
      %v348 = vld [vmem:[%s328 + $0x2c] sm:$0xf]
      %v349 = vld [vmem:[%s328 + $0x30] sm:$0xf]
      %v350 = vld [vmem:[%s328 + $0x34] sm:$0xf]
      %v351 = vld [vmem:[%s328 + $0x38] sm:$0xf]
      %v352 = vld [vmem:[%s328 + $0x3c] sm:$0xf]
      %v353 = vld [vmem:[%s1] sm:$0xf]
      %v354 = vld [vmem:[%s1 + $0x4] sm:$0xf]
      %v355 = vld [vmem:[%s1 + $0x8] sm:$0xf]
      %v356 = vld [vmem:[%s1 + $0xc] sm:$0xf]
      %v357 = vld [vmem:[%s2] sm:$0x1]
      %v359 = vlaneseq
      %v360 = vshrl.u32 %v359, 7
      %v361 = vsub.s32 0, %v360
      %v362 = vrot.slane %v357, %v361
      %v380 = vunpack.c.l.b16 %v337
      %v381 = vunpack.c.l.b16 %v338
      %v382 = vunpack.c.l.b16 %v339
      %v383 = vunpack.c.l.b16 %v340
      %v384 = vunpack.c.l.b16 %v341
      %v385 = vunpack.c.l.b16 %v342
      %v386 = vunpack.c.l.b16 %v343
      %v387 = vunpack.c.l.b16 %v344
      %v388 = vunpack.c.l.b16 %v345
      %v389 = vunpack.c.l.b16 %v346
      %v390 = vunpack.c.l.b16 %v347
      %v391 = vunpack.c.l.b16 %v348
      %v392 = vunpack.c.l.b16 %v349
      %v393 = vunpack.c.l.b16 %v350
      %v394 = vunpack.c.l.b16 %v351
      %v395 = vunpack.c.l.b16 %v352
      %v396 = vpack.c.b16 %v381, %v380
      %v397 = vpack.c.b16 %v383, %v382
      %v398 = vpack.c.b16 %v385, %v384
      %v399 = vpack.c.b16 %v387, %v386
      %v400 = vpack.c.b16 %v389, %v388
      %v401 = vpack.c.b16 %v391, %v390
      %v402 = vpack.c.b16 %v393, %v392
      %v403 = vpack.c.b16 %v395, %v394
      %v408 = vunpack.c.l.b16 %v353
      %v409 = vunpack.c.l.b16 %v354
      %v410 = vunpack.c.l.b16 %v355
      %v411 = vunpack.c.l.b16 %v356
      %v412 = vpack.c.b16 %v409, %v408
      %v413 = vpack.c.b16 %v411, %v410
      %vm416 = vcmask 261120
      %v418 = vsel %vm416, %v396, 0
      %v421 = vsel %vm416, %v397, 0
      %v424 = vsel %vm416, %v398, 0
      %v427 = vsel %vm416, %v399, 0
      %v430 = vsel %vm416, %v400, 0
      %v433 = vsel %vm416, %v401, 0
      %v436 = vsel %vm416, %v402, 0
      %v439 = vsel %vm416, %v403, 0
      %441 = vmatprep.subr.bf16.mxu0 0
      %442 = vmatpush1.bf16.msra.mxu0 %v412
      %443 = vmatprep.subr.bf16.mxu0 0
      %444 = vmatpush1.bf16.msra.mxu0 %v413
      %445 = vmatprep.subr.bf16.mxu0 0
      %446 = vmatpush1.bf16.msra.mxu0 0
      %447 = vmatprep.subr.bf16.mxu0 0
      %448 = vmatpush1.bf16.msra.mxu0 0
      %449 = vmatprep.subr.bf16.mxu0 0
      %450 = vmatpush1.bf16.msra.mxu0 0
      %451 = vmatprep.subr.bf16.mxu0 0
      %452 = vmatpush1.bf16.msra.mxu0 0
      %453 = vmatprep.subr.bf16.mxu0 0
      %454 = vmatpush1.bf16.msra.mxu0 0
      %455 = vmatprep.subr.bf16.mxu0 0
      %456 = vmatpush1.bf16.msra.mxu0 0
      %457 = vmatprep.subr.bf16.mxu0 0
      %458 = vmatpush1.bf16.msra.mxu0 0
      %459 = vmatprep.subr.bf16.mxu0 0
      %460 = vmatpush1.bf16.msra.mxu0 0
      %461 = vmatprep.subr.bf16.mxu0 0
      %462 = vmatpush1.bf16.msra.mxu0 0
      %463 = vmatprep.subr.bf16.mxu0 0
      %464 = vmatpush1.bf16.msra.mxu0 0
      %465 = vmatprep.subr.bf16.mxu0 0
      %466 = vmatpush1.bf16.msra.mxu0 0
      %467 = vmatprep.subr.bf16.mxu0 0
      %468 = vmatpush1.bf16.msra.mxu0 0
      %469 = vmatprep.subr.bf16.mxu0 0
      %470 = vmatpush1.bf16.msra.mxu0 0
      %471 = vmatprep.subr.bf16.mxu0 0
      %472 = vmatpush1.bf16.msra.mxu0 0
      %473 = vmatprep.mubr.bf16.mxu0 0
      %474 = vmatmul.mubr.bf16.gmra.mrb[0].mxu0 %v418
      %v475 = vpop.f32.mrb[0].mxu0
      %v476 = vadd.f32 %v362, %v475
      %v477 = vpop.f32.mrb[0].mxu0
      %v478 = vpop.f32.mrb[0].mxu0
      %v479 = vadd.f32 %v362, %v478
      %v480 = vpop.f32.mrb[0].mxu0
      %481 = vmatprep.mubr.bf16.mxu0 0
      %482 = vmatmul.mubr.bf16.gmra.mrb[0].mxu0 %v421
      %v483 = vpop.f32.mrb[0].mxu0
      %v484 = vadd.f32 %v362, %v483
      %v485 = vpop.f32.mrb[0].mxu0
      %v486 = vpop.f32.mrb[0].mxu0
      %v487 = vadd.f32 %v362, %v486
      %v488 = vpop.f32.mrb[0].mxu0
      %489 = vmatprep.mubr.bf16.mxu0 0
      %490 = vmatmul.mubr.bf16.gmra.mrb[0].mxu0 %v424
      %v491 = vpop.f32.mrb[0].mxu0
      %v492 = vadd.f32 %v362, %v491
      %v493 = vpop.f32.mrb[0].mxu0
      %v494 = vpop.f32.mrb[0].mxu0
      %v495 = vadd.f32 %v362, %v494
      %v496 = vpop.f32.mrb[0].mxu0
      %497 = vmatprep.mubr.bf16.mxu0 0
      %498 = vmatmul.mubr.bf16.gmra.mrb[0].mxu0 %v427
      %v499 = vpop.f32.mrb[0].mxu0
      %v500 = vadd.f32 %v362, %v499
      %v501 = vpop.f32.mrb[0].mxu0
      %v502 = vpop.f32.mrb[0].mxu0
      %v503 = vadd.f32 %v362, %v502
      %v504 = vpop.f32.mrb[0].mxu0
      %505 = vmatprep.mubr.bf16.mxu0 0
      %506 = vmatmul.mubr.bf16.gmra.mrb[0].mxu0 %v430
      %v507 = vpop.f32.mrb[0].mxu0
      %v508 = vadd.f32 %v362, %v507
      %v509 = vpop.f32.mrb[0].mxu0
      %v510 = vpop.f32.mrb[0].mxu0
      %v511 = vadd.f32 %v362, %v510
      %v512 = vpop.f32.mrb[0].mxu0
      %513 = vmatprep.mubr.bf16.mxu0 0
      %514 = vmatmul.mubr.bf16.gmra.mrb[0].mxu0 %v433
      %v515 = vpop.f32.mrb[0].mxu0
      %v516 = vadd.f32 %v362, %v515
      %v517 = vpop.f32.mrb[0].mxu0
      %v518 = vpop.f32.mrb[0].mxu0
      %v519 = vadd.f32 %v362, %v518
      %v520 = vpop.f32.mrb[0].mxu0
      %521 = vmatprep.mubr.bf16.mxu0 0
      %522 = vmatmul.mubr.bf16.gmra.mrb[0].mxu0 %v436
      %v523 = vpop.f32.mrb[0].mxu0
      %v524 = vadd.f32 %v362, %v523
      %v525 = vpop.f32.mrb[0].mxu0
      %v526 = vpop.f32.mrb[0].mxu0
      %v527 = vadd.f32 %v362, %v526
      %v528 = vpop.f32.mrb[0].mxu0
      %529 = vmatprep.mubr.bf16.mxu0 0
      %530 = vmatmul.mubr.bf16.gmra.mrb[0].mxu0 %v439
      %v531 = vpop.f32.mrb[0].mxu0
      %v532 = vadd.f32 %v362, %v531
      %v533 = vpop.f32.mrb[0].mxu0
      %v534 = vpop.f32.mrb[0].mxu0
      %v535 = vadd.f32 %v362, %v534
      %v536 = vpop.f32.mrb[0].mxu0
      %537 = vdwg.mxu0
      %v538 = vtanh.pop %v476
      %v539 = vtanh.pop %v479
      %v540 = vtanh.pop %v484
      %v541 = vtanh.pop %v487
      %v542 = vtanh.pop %v492
      %v543 = vtanh.pop %v495
      %v544 = vtanh.pop %v500
      %v545 = vtanh.pop %v503
      %v546 = vtanh.pop %v508
      %v547 = vtanh.pop %v511
      %v548 = vtanh.pop %v516
      %v549 = vtanh.pop %v519
      %v550 = vtanh.pop %v524
      %v551 = vtanh.pop %v527
      %v552 = vtanh.pop %v532
      %v553 = vtanh.pop %v535
      %v554 = vpack.c.bf16 %v539, %v538
      %v555 = vpack.c.bf16 %v541, %v540
      %v556 = vpack.c.bf16 %v543, %v542
      %v557 = vpack.c.bf16 %v545, %v544
      %v558 = vpack.c.bf16 %v547, %v546
      %v559 = vpack.c.bf16 %v549, %v548
      %v560 = vpack.c.bf16 %v551, %v550
      %v561 = vpack.c.bf16 %v553, %v552
      %v562 = vld [vmem:[%s3] sm:$0xf]
      %v563 = vld [vmem:[%s3 + $0x4] sm:$0xf]
      %v564 = vld [vmem:[%s4] sm:$0x1]
      %v566 = vlaneseq
      %v567 = vshrl.u32 %v566, 7
      %v568 = vsub.s32 0, %v567
      %v569 = vrot.slane %v564, %v568
      %v573 = vunpack.c.l.b16 %v562
      %v574 = vunpack.c.l.b16 %v563
      %v575 = vpack.c.b16 %v574, %v573
      %vm577 = vcmask 130048
      %v579 = vsel %vm577, %v554, 0
      %v582 = vsel %vm577, %v555, 0
      %v585 = vsel %vm577, %v556, 0
      %v588 = vsel %vm577, %v557, 0
      %v591 = vsel %vm577, %v558, 0
      %v594 = vsel %vm577, %v559, 0
      %v597 = vsel %vm577, %v560, 0
      %v600 = vsel %vm577, %v561, 0
      %602 = vmatprep.subr.bf16.mxu0 0
      %603 = vmatpush1.bf16.msra.mxu0 %v575
      %604 = vmatprep.subr.bf16.mxu0 0
      %605 = vmatpush1.bf16.msra.mxu0 0
      %606 = vmatprep.subr.bf16.mxu0 0
      %607 = vmatpush1.bf16.msra.mxu0 0
      %608 = vmatprep.subr.bf16.mxu0 0
      %609 = vmatpush1.bf16.msra.mxu0 0
      %610 = vmatprep.subr.bf16.mxu0 0
      %611 = vmatpush1.bf16.msra.mxu0 0
      %612 = vmatprep.subr.bf16.mxu0 0
      %613 = vmatpush1.bf16.msra.mxu0 0
      %614 = vmatprep.subr.bf16.mxu0 0
      %615 = vmatpush1.bf16.msra.mxu0 0
      %616 = vmatprep.subr.bf16.mxu0 0
      %617 = vmatpush1.bf16.msra.mxu0 0
      %618 = vmatprep.subr.bf16.mxu0 0
      %619 = vmatpush1.bf16.msra.mxu0 0
      %620 = vmatprep.subr.bf16.mxu0 0
      %621 = vmatpush1.bf16.msra.mxu0 0
      %622 = vmatprep.subr.bf16.mxu0 0
      %623 = vmatpush1.bf16.msra.mxu0 0
      %624 = vmatprep.subr.bf16.mxu0 0
      %625 = vmatpush1.bf16.msra.mxu0 0
      %626 = vmatprep.subr.bf16.mxu0 0
      %627 = vmatpush1.bf16.msra.mxu0 0
      %628 = vmatprep.subr.bf16.mxu0 0
      %629 = vmatpush1.bf16.msra.mxu0 0
      %630 = vmatprep.subr.bf16.mxu0 0
      %631 = vmatpush1.bf16.msra.mxu0 0
      %632 = vmatprep.subr.bf16.mxu0 0
      %633 = vmatpush1.bf16.msra.mxu0 0
      %634 = vmatprep.mubr.bf16.mxu0 0
      %635 = vmatmul.mubr.bf16.gmra.mrb[0].mxu0 %v579
      %v636 = vpop.f32.mrb[0].mxu0
      %v637 = vadd.f32 %v569, %v636
      %v638 = vpop.f32.mrb[0].mxu0
      %v639 = vpop.f32.mrb[0].mxu0
      %v640 = vadd.f32 %v569, %v639
      %v641 = vpop.f32.mrb[0].mxu0
      %642 = vmatprep.mubr.bf16.mxu0 0
      %643 = vmatmul.mubr.bf16.gmra.mrb[0].mxu0 %v582
      %v644 = vpop.f32.mrb[0].mxu0
      %v645 = vadd.f32 %v569, %v644
      %v646 = vpop.f32.mrb[0].mxu0
      %v647 = vpop.f32.mrb[0].mxu0
      %v648 = vadd.f32 %v569, %v647
      %v649 = vpop.f32.mrb[0].mxu0
      %650 = vmatprep.mubr.bf16.mxu0 0
      %651 = vmatmul.mubr.bf16.gmra.mrb[0].mxu0 %v585
      %v652 = vpop.f32.mrb[0].mxu0
      %v653 = vadd.f32 %v569, %v652
      %v654 = vpop.f32.mrb[0].mxu0
      %v655 = vpop.f32.mrb[0].mxu0
      %v656 = vadd.f32 %v569, %v655
      %v657 = vpop.f32.mrb[0].mxu0
      %658 = vmatprep.mubr.bf16.mxu0 0
      %659 = vmatmul.mubr.bf16.gmra.mrb[0].mxu0 %v588
      %v660 = vpop.f32.mrb[0].mxu0
      %v661 = vadd.f32 %v569, %v660
      %v662 = vpop.f32.mrb[0].mxu0
      %v663 = vpop.f32.mrb[0].mxu0
      %v664 = vadd.f32 %v569, %v663
      %v665 = vpop.f32.mrb[0].mxu0
      %666 = vmatprep.mubr.bf16.mxu0 0
      %667 = vmatmul.mubr.bf16.gmra.mrb[0].mxu0 %v591
      %v668 = vpop.f32.mrb[0].mxu0
      %v669 = vadd.f32 %v569, %v668
      %v670 = vpop.f32.mrb[0].mxu0
      %v671 = vpop.f32.mrb[0].mxu0
      %v672 = vadd.f32 %v569, %v671
      %v673 = vpop.f32.mrb[0].mxu0
      %674 = vmatprep.mubr.bf16.mxu0 0
      %675 = vmatmul.mubr.bf16.gmra.mrb[0].mxu0 %v594
      %v676 = vpop.f32.mrb[0].mxu0
      %v677 = vadd.f32 %v569, %v676
      %v678 = vpop.f32.mrb[0].mxu0
      %v679 = vpop.f32.mrb[0].mxu0
      %v680 = vadd.f32 %v569, %v679
      %v681 = vpop.f32.mrb[0].mxu0
      %682 = vmatprep.mubr.bf16.mxu0 0
      %683 = vmatmul.mubr.bf16.gmra.mrb[0].mxu0 %v597
      %v684 = vpop.f32.mrb[0].mxu0
      %v685 = vadd.f32 %v569, %v684
      %v686 = vpop.f32.mrb[0].mxu0
      %v687 = vpop.f32.mrb[0].mxu0
      %v688 = vadd.f32 %v569, %v687
      %v689 = vpop.f32.mrb[0].mxu0
      %690 = vmatprep.mubr.bf16.mxu0 0
      %691 = vmatmul.mubr.bf16.gmra.mrb[0].mxu0 %v600
      %v692 = vpop.f32.mrb[0].mxu0
      %v693 = vadd.f32 %v569, %v692
      %v694 = vpop.f32.mrb[0].mxu0
      %v695 = vpop.f32.mrb[0].mxu0
      %v696 = vadd.f32 %v569, %v695
      %v697 = vpop.f32.mrb[0].mxu0
      %698 = vdwg.mxu0
      %v699 = vpack.c.bf16 %v640, %v637
      %v700 = vpack.c.bf16 %v648, %v645
      %v701 = vpack.c.bf16 %v656, %v653
      %v702 = vpack.c.bf16 %v664, %v661
      %v703 = vpack.c.bf16 %v672, %v669
      %v704 = vpack.c.bf16 %v680, %v677
      %v705 = vpack.c.bf16 %v688, %v685
      %v706 = vpack.c.bf16 %v696, %v693
      %v707 = vld [vmem:[%s5] sm:$0xf]
      %v708 = vld [vmem:[%s6] sm:$0x1]
      %v710 = vlaneseq
      %v711 = vshrl.u32 %v710, 7
      %v712 = vsub.s32 0, %v711
      %v713 = vrot.slane %v708, %v712
      %vm715 = vcmask 64512
      %v717 = vsel %vm715, %v699, 0
      %v720 = vsel %vm715, %v700, 0
      %v723 = vsel %vm715, %v701, 0
      %v726 = vsel %vm715, %v702, 0
      %v729 = vsel %vm715, %v703, 0
      %v732 = vsel %vm715, %v704, 0
      %v735 = vsel %vm715, %v705, 0
      %v738 = vsel %vm715, %v706, 0
      %vm740 = vcmask 1043456
      %v742 = vsel %vm740, %v707, 0
      %744 = vmatprep.subr.bf16.mxu0 0
      %745 = vmatpush1.bf16.msra.mxu0 %v742
      %746 = vmatprep.subr.bf16.mxu0 0
      %747 = vmatpush1.bf16.msra.mxu0 0
      %748 = vmatprep.subr.bf16.mxu0 0
      %749 = vmatpush1.bf16.msra.mxu0 0
      %750 = vmatprep.subr.bf16.mxu0 0
      %751 = vmatpush1.bf16.msra.mxu0 0
      %752 = vmatprep.subr.bf16.mxu0 0
      %753 = vmatpush1.bf16.msra.mxu0 0
      %754 = vmatprep.subr.bf16.mxu0 0
      %755 = vmatpush1.bf16.msra.mxu0 0
      %756 = vmatprep.subr.bf16.mxu0 0
      %757 = vmatpush1.bf16.msra.mxu0 0
      %758 = vmatprep.subr.bf16.mxu0 0
      %759 = vmatpush1.bf16.msra.mxu0 0
      %760 = vmatprep.subr.bf16.mxu0 0
      %761 = vmatpush1.bf16.msra.mxu0 0
      %762 = vmatprep.subr.bf16.mxu0 0
      %763 = vmatpush1.bf16.msra.mxu0 0
      %764 = vmatprep.subr.bf16.mxu0 0
      %765 = vmatpush1.bf16.msra.mxu0 0
      %766 = vmatprep.subr.bf16.mxu0 0
      %767 = vmatpush1.bf16.msra.mxu0 0
      %768 = vmatprep.subr.bf16.mxu0 0
      %769 = vmatpush1.bf16.msra.mxu0 0
      %770 = vmatprep.subr.bf16.mxu0 0
      %771 = vmatpush1.bf16.msra.mxu0 0
      %772 = vmatprep.subr.bf16.mxu0 0
      %773 = vmatpush1.bf16.msra.mxu0 0
      %774 = vmatprep.subr.bf16.mxu0 0
      %775 = vmatpush1.bf16.msra.mxu0 0
      %776 = vmatprep.mubr.bf16.mxu0 0
      %777 = vmatmul.mubr.bf16.gmra.mrb[0].mxu0 %v717
      %v778 = vpop.f32.mrb[0].mxu0
      %v779 = vadd.f32 %v713, %v778
      %v780 = vpop.f32.mrb[0].mxu0
      %v781 = vpop.f32.mrb[0].mxu0
      %v782 = vadd.f32 %v713, %v781
      %v783 = vpop.f32.mrb[0].mxu0
      %784 = vmatprep.mubr.bf16.mxu0 0
      %785 = vmatmul.mubr.bf16.gmra.mrb[0].mxu0 %v720
      %v786 = vpop.f32.mrb[0].mxu0
      %v787 = vadd.f32 %v713, %v786
      %v788 = vpop.f32.mrb[0].mxu0
      %v789 = vpop.f32.mrb[0].mxu0
      %v790 = vadd.f32 %v713, %v789
      %v791 = vpop.f32.mrb[0].mxu0
      %792 = vmatprep.mubr.bf16.mxu0 0
      %793 = vmatmul.mubr.bf16.gmra.mrb[0].mxu0 %v723
      %v794 = vpop.f32.mrb[0].mxu0
      %v795 = vadd.f32 %v713, %v794
      %v796 = vpop.f32.mrb[0].mxu0
      %v797 = vpop.f32.mrb[0].mxu0
      %v798 = vadd.f32 %v713, %v797
      %v799 = vpop.f32.mrb[0].mxu0
      %800 = vmatprep.mubr.bf16.mxu0 0
      %801 = vmatmul.mubr.bf16.gmra.mrb[0].mxu0 %v726
      %v802 = vpop.f32.mrb[0].mxu0
      %v803 = vadd.f32 %v713, %v802
      %v804 = vpop.f32.mrb[0].mxu0
      %v805 = vpop.f32.mrb[0].mxu0
      %v806 = vadd.f32 %v713, %v805
      %v807 = vpop.f32.mrb[0].mxu0
      %808 = vmatprep.mubr.bf16.mxu0 0
      %809 = vmatmul.mubr.bf16.gmra.mrb[0].mxu0 %v729
      %v810 = vpop.f32.mrb[0].mxu0
      %v811 = vadd.f32 %v713, %v810
      %v812 = vpop.f32.mrb[0].mxu0
      %v813 = vpop.f32.mrb[0].mxu0
      %v814 = vadd.f32 %v713, %v813
      %v815 = vpop.f32.mrb[0].mxu0
      %816 = vmatprep.mubr.bf16.mxu0 0
      %817 = vmatmul.mubr.bf16.gmra.mrb[0].mxu0 %v732
      %v818 = vpop.f32.mrb[0].mxu0
      %v819 = vadd.f32 %v713, %v818
      %v820 = vpop.f32.mrb[0].mxu0
      %v821 = vpop.f32.mrb[0].mxu0
      %v822 = vadd.f32 %v713, %v821
      %v823 = vpop.f32.mrb[0].mxu0
      %824 = vmatprep.mubr.bf16.mxu0 0
      %825 = vmatmul.mubr.bf16.gmra.mrb[0].mxu0 %v735
      %v826 = vpop.f32.mrb[0].mxu0
      %v827 = vadd.f32 %v713, %v826
      %v828 = vpop.f32.mrb[0].mxu0
      %v829 = vpop.f32.mrb[0].mxu0
      %v830 = vadd.f32 %v713, %v829
      %v831 = vpop.f32.mrb[0].mxu0
      %832 = vmatprep.mubr.bf16.mxu0 0
      %833 = vmatmul.mubr.bf16.gmra.mrb[0].mxu0 %v738
      %v834 = vpop.f32.mrb[0].mxu0
      %v835 = vadd.f32 %v713, %v834
      %v836 = vpop.f32.mrb[0].mxu0
      %v837 = vpop.f32.mrb[0].mxu0
      %v838 = vadd.f32 %v713, %v837
      %v839 = vpop.f32.mrb[0].mxu0
      %840 = vdwg.mxu0
      %v841 = vtanh.pop %v779
      %v842 = vtanh.pop %v782
      %v843 = vtanh.pop %v787
      %v844 = vtanh.pop %v790
      %v845 = vtanh.pop %v795
      %v846 = vtanh.pop %v798
      %v847 = vtanh.pop %v803
      %v848 = vtanh.pop %v806
      %v849 = vtanh.pop %v811
      %v850 = vtanh.pop %v814
      %v851 = vtanh.pop %v819
      %v852 = vtanh.pop %v822
      %v853 = vtanh.pop %v827
      %v854 = vtanh.pop %v830
      %v855 = vtanh.pop %v835
      %v856 = vtanh.pop %v838
      %v857 = vpack.c.bf16 %v842, %v841
      %v858 = vpack.c.bf16 %v844, %v843
      %v859 = vpack.c.bf16 %v846, %v845
      %v860 = vpack.c.bf16 %v848, %v847
      %v861 = vpack.c.bf16 %v850, %v849
      %v862 = vpack.c.bf16 %v852, %v851
      %v863 = vpack.c.bf16 %v854, %v853
      %v864 = vpack.c.bf16 %v856, %v855
      %v865 = vld [vmem:[%s7] sm:$0xf]
      %v866 = vld [vmem:[%s7 + $0x4] sm:$0xf]
      %v867 = vld [vmem:[%s8] sm:$0x1]
      %v869 = vlaneseq
      %v870 = vshrl.u32 %v869, 7
      %v871 = vsub.s32 0, %v870
      %v872 = vrot.slane %v867, %v871
      %v876 = vunpack.c.l.b16 %v865
      %v877 = vunpack.c.l.b16 %v866
      %v878 = vpack.c.b16 %v877, %v876
      %v881 = vsel %vm577, %v857, 0
      %v884 = vsel %vm577, %v858, 0
      %v887 = vsel %vm577, %v859, 0
      %v890 = vsel %vm577, %v860, 0
      %v893 = vsel %vm577, %v861, 0
      %v896 = vsel %vm577, %v862, 0
      %v899 = vsel %vm577, %v863, 0
      %v902 = vsel %vm577, %v864, 0
      %904 = vmatprep.subr.bf16.mxu0 0
      %905 = vmatpush1.bf16.msra.mxu0 %v878
      %906 = vmatprep.subr.bf16.mxu0 0
      %907 = vmatpush1.bf16.msra.mxu0 0
      %908 = vmatprep.subr.bf16.mxu0 0
      %909 = vmatpush1.bf16.msra.mxu0 0
      %910 = vmatprep.subr.bf16.mxu0 0
      %911 = vmatpush1.bf16.msra.mxu0 0
      %912 = vmatprep.subr.bf16.mxu0 0
      %913 = vmatpush1.bf16.msra.mxu0 0
      %914 = vmatprep.subr.bf16.mxu0 0
      %915 = vmatpush1.bf16.msra.mxu0 0
      %916 = vmatprep.subr.bf16.mxu0 0
      %917 = vmatpush1.bf16.msra.mxu0 0
      %918 = vmatprep.subr.bf16.mxu0 0
      %919 = vmatpush1.bf16.msra.mxu0 0
      %920 = vmatprep.subr.bf16.mxu0 0
      %921 = vmatpush1.bf16.msra.mxu0 0
      %922 = vmatprep.subr.bf16.mxu0 0
      %923 = vmatpush1.bf16.msra.mxu0 0
      %924 = vmatprep.subr.bf16.mxu0 0
      %925 = vmatpush1.bf16.msra.mxu0 0
      %926 = vmatprep.subr.bf16.mxu0 0
      %927 = vmatpush1.bf16.msra.mxu0 0
      %928 = vmatprep.subr.bf16.mxu0 0
      %929 = vmatpush1.bf16.msra.mxu0 0
      %930 = vmatprep.subr.bf16.mxu0 0
      %931 = vmatpush1.bf16.msra.mxu0 0
      %932 = vmatprep.subr.bf16.mxu0 0
      %933 = vmatpush1.bf16.msra.mxu0 0
      %934 = vmatprep.subr.bf16.mxu0 0
      %935 = vmatpush1.bf16.msra.mxu0 0
      %936 = vmatprep.mubr.bf16.mxu0 0
      %937 = vmatmul.mubr.bf16.gmra.mrb[0].mxu0 %v881
      %v938 = vpop.f32.mrb[0].mxu0
      %v939 = vadd.f32 %v872, %v938
      %v940 = vpop.f32.mrb[0].mxu0
      %v941 = vpop.f32.mrb[0].mxu0
      %v942 = vadd.f32 %v872, %v941
      %v943 = vpop.f32.mrb[0].mxu0
      %944 = vmatprep.mubr.bf16.mxu0 0
      %945 = vmatmul.mubr.bf16.gmra.mrb[0].mxu0 %v884
      %v946 = vpop.f32.mrb[0].mxu0
      %v947 = vadd.f32 %v872, %v946
      %v948 = vpop.f32.mrb[0].mxu0
      %v949 = vpop.f32.mrb[0].mxu0
      %v950 = vadd.f32 %v872, %v949
      %v951 = vpop.f32.mrb[0].mxu0
      %952 = vmatprep.mubr.bf16.mxu0 0
      %953 = vmatmul.mubr.bf16.gmra.mrb[0].mxu0 %v887
      %v954 = vpop.f32.mrb[0].mxu0
      %v955 = vadd.f32 %v872, %v954
      %v956 = vpop.f32.mrb[0].mxu0
      %v957 = vpop.f32.mrb[0].mxu0
      %v958 = vadd.f32 %v872, %v957
      %v959 = vpop.f32.mrb[0].mxu0
      %960 = vmatprep.mubr.bf16.mxu0 0
      %961 = vmatmul.mubr.bf16.gmra.mrb[0].mxu0 %v890
      %v962 = vpop.f32.mrb[0].mxu0
      %v963 = vadd.f32 %v872, %v962
      %v964 = vpop.f32.mrb[0].mxu0
      %v965 = vpop.f32.mrb[0].mxu0
      %v966 = vadd.f32 %v872, %v965
      %v967 = vpop.f32.mrb[0].mxu0
      %968 = vmatprep.mubr.bf16.mxu0 0
      %969 = vmatmul.mubr.bf16.gmra.mrb[0].mxu0 %v893
      %v970 = vpop.f32.mrb[0].mxu0
      %v971 = vadd.f32 %v872, %v970
      %v972 = vpop.f32.mrb[0].mxu0
      %v973 = vpop.f32.mrb[0].mxu0
      %v974 = vadd.f32 %v872, %v973
      %v975 = vpop.f32.mrb[0].mxu0
      %976 = vmatprep.mubr.bf16.mxu0 0
      %977 = vmatmul.mubr.bf16.gmra.mrb[0].mxu0 %v896
      %v978 = vpop.f32.mrb[0].mxu0
      %v979 = vadd.f32 %v872, %v978
      %v980 = vpop.f32.mrb[0].mxu0
      %v981 = vpop.f32.mrb[0].mxu0
      %v982 = vadd.f32 %v872, %v981
      %v983 = vpop.f32.mrb[0].mxu0
      %984 = vmatprep.mubr.bf16.mxu0 0
      %985 = vmatmul.mubr.bf16.gmra.mrb[0].mxu0 %v899
      %v986 = vpop.f32.mrb[0].mxu0
      %v987 = vadd.f32 %v872, %v986
      %v988 = vpop.f32.mrb[0].mxu0
      %v989 = vpop.f32.mrb[0].mxu0
      %v990 = vadd.f32 %v872, %v989
      %v991 = vpop.f32.mrb[0].mxu0
      %992 = vmatprep.mubr.bf16.mxu0 0
      %993 = vmatmul.mubr.bf16.gmra.mrb[0].mxu0 %v902
      %v994 = vpop.f32.mrb[0].mxu0
      %v995 = vadd.f32 %v872, %v994
      %v996 = vpop.f32.mrb[0].mxu0
      %v997 = vpop.f32.mrb[0].mxu0
      %v998 = vadd.f32 %v872, %v997
      %v999 = vpop.f32.mrb[0].mxu0
      %1000 = vdwg.mxu0
      %v1001 = vxor.u32 %v939, 2147483648
      %v1002 = vxor.u32 %v942, 2147483648
      %v1003 = vxor.u32 %v947, 2147483648
      %v1004 = vxor.u32 %v950, 2147483648
      %v1005 = vxor.u32 %v955, 2147483648
      %v1006 = vxor.u32 %v958, 2147483648
      %v1007 = vxor.u32 %v963, 2147483648
      %v1008 = vxor.u32 %v966, 2147483648
      %v1009 = vxor.u32 %v971, 2147483648
      %v1010 = vxor.u32 %v974, 2147483648
      %v1011 = vxor.u32 %v979, 2147483648
      %v1012 = vxor.u32 %v982, 2147483648
      %v1013 = vxor.u32 %v987, 2147483648
      %v1014 = vxor.u32 %v990, 2147483648
      %v1015 = vxor.u32 %v995, 2147483648
      %v1016 = vxor.u32 %v998, 2147483648
      %v1017 = vmul.f32 %v1001, 1.442695
      %v1018 = vpow.pop %v1017
      %v1019 = vmul.f32 %v1002, 1.442695
      %v1020 = vpow.pop %v1019
      %v1021 = vmul.f32 %v1003, 1.442695
      %v1022 = vpow.pop %v1021
      %v1023 = vmul.f32 %v1004, 1.442695
      %v1024 = vpow.pop %v1023
      %v1025 = vmul.f32 %v1005, 1.442695
      %v1026 = vpow.pop %v1025
      %v1027 = vmul.f32 %v1006, 1.442695
      %v1028 = vpow.pop %v1027
      %v1029 = vmul.f32 %v1007, 1.442695
      %v1030 = vpow.pop %v1029
      %v1031 = vmul.f32 %v1008, 1.442695
      %v1032 = vpow.pop %v1031
      %v1033 = vmul.f32 %v1009, 1.442695
      %v1034 = vpow.pop %v1033
      %v1035 = vmul.f32 %v1010, 1.442695
      %v1036 = vpow.pop %v1035
      %v1037 = vmul.f32 %v1011, 1.442695
      %v1038 = vpow.pop %v1037
      %v1039 = vmul.f32 %v1012, 1.442695
      %v1040 = vpow.pop %v1039
      %v1041 = vmul.f32 %v1013, 1.442695
      %v1042 = vpow.pop %v1041
      %v1043 = vmul.f32 %v1014, 1.442695
      %v1044 = vpow.pop %v1043
      %v1045 = vmul.f32 %v1015, 1.442695
      %v1046 = vpow.pop %v1045
      %v1047 = vmul.f32 %v1016, 1.442695
      %v1048 = vpow.pop %v1047
      %v1049 = vadd.f32 %v1018, 1.0
      %v1050 = vadd.f32 %v1020, 1.0
      %v1051 = vadd.f32 %v1022, 1.0
      %v1052 = vadd.f32 %v1024, 1.0
      %v1053 = vadd.f32 %v1026, 1.0
      %v1054 = vadd.f32 %v1028, 1.0
      %v1055 = vadd.f32 %v1030, 1.0
      %v1056 = vadd.f32 %v1032, 1.0
      %v1057 = vadd.f32 %v1034, 1.0
      %v1058 = vadd.f32 %v1036, 1.0
      %v1059 = vadd.f32 %v1038, 1.0
      %v1060 = vadd.f32 %v1040, 1.0
      %v1061 = vadd.f32 %v1042, 1.0
      %v1062 = vadd.f32 %v1044, 1.0
      %v1063 = vadd.f32 %v1046, 1.0
      %v1064 = vadd.f32 %v1048, 1.0
      %v1065 = vrcp.pop %v1049
      %v1066 = vmul.f32 1.0, %v1065
      %v1067 = vrcp.pop %v1050
      %v1068 = vmul.f32 1.0, %v1067
      %v1069 = vrcp.pop %v1051
      %v1070 = vmul.f32 1.0, %v1069
      %v1071 = vrcp.pop %v1052
      %v1072 = vmul.f32 1.0, %v1071
      %v1073 = vrcp.pop %v1053
      %v1074 = vmul.f32 1.0, %v1073
      %v1075 = vrcp.pop %v1054
      %v1076 = vmul.f32 1.0, %v1075
      %v1077 = vrcp.pop %v1055
      %v1078 = vmul.f32 1.0, %v1077
      %v1079 = vrcp.pop %v1056
      %v1080 = vmul.f32 1.0, %v1079
      %v1081 = vrcp.pop %v1057
      %v1082 = vmul.f32 1.0, %v1081
      %v1083 = vrcp.pop %v1058
      %v1084 = vmul.f32 1.0, %v1083
      %v1085 = vrcp.pop %v1059
      %v1086 = vmul.f32 1.0, %v1085
      %v1087 = vrcp.pop %v1060
      %v1088 = vmul.f32 1.0, %v1087
      %v1089 = vrcp.pop %v1061
      %v1090 = vmul.f32 1.0, %v1089
      %v1091 = vrcp.pop %v1062
      %v1092 = vmul.f32 1.0, %v1091
      %v1093 = vrcp.pop %v1063
      %v1094 = vmul.f32 1.0, %v1093
      %v1095 = vrcp.pop %v1064
      %v1096 = vmul.f32 1.0, %v1095
      %1097 = vst [vmem:[%s334] sm:$0xf] 0
      %1098 = vst [vmem:[%s334 + $0x4] sm:$0xf] 0
      %1099 = vst [vmem:[%s334 + $0x8] sm:$0xf] 0
      %1100 = vst [vmem:[%s334 + $0xc] sm:$0xf] 0
      %1101 = vst [vmem:[%s334 + $0x10] sm:$0xf] 0
      %1102 = vst [vmem:[%s334 + $0x14] sm:$0xf] 0
      %1103 = vst [vmem:[%s334 + $0x18] sm:$0xf] 0
      %1104 = vst [vmem:[%s334 + $0x1c] sm:$0xf] 0
      %1105 = vst [vmem:[%s334 + $0x20] sm:$0xf] 0
      %1106 = vst [vmem:[%s334 + $0x24] sm:$0xf] 0
      %1107 = vst [vmem:[%s334 + $0x28] sm:$0xf] 0
      %1108 = vst [vmem:[%s334 + $0x2c] sm:$0xf] 0
      %1109 = vst [vmem:[%s334 + $0x30] sm:$0xf] 0
      %1110 = vst [vmem:[%s334 + $0x34] sm:$0xf] 0
      %1111 = vst [vmem:[%s334 + $0x38] sm:$0xf] 0
      %1112 = vst [vmem:[%s334 + $0x3c] sm:$0xf] 0
      %v1113 = vpack.c.bf16 %v1068, %v1066
      %v1114 = vpack.c.bf16 %v1072, %v1070
      %v1115 = vpack.c.bf16 %v1076, %v1074
      %v1116 = vpack.c.bf16 %v1080, %v1078
      %v1117 = vpack.c.bf16 %v1084, %v1082
      %v1118 = vpack.c.bf16 %v1088, %v1086
      %v1119 = vpack.c.bf16 %v1092, %v1090
      %v1120 = vpack.c.bf16 %v1096, %v1094
      %v1129 = vunpack.c.l.b16 %v1113
      %v1130 = vunpack.c.h.b16 %v1113
      %v1131 = vunpack.c.l.b16 %v1114
      %v1132 = vunpack.c.h.b16 %v1114
      %v1133 = vunpack.c.l.b16 %v1115
      %v1134 = vunpack.c.h.b16 %v1115
      %v1135 = vunpack.c.l.b16 %v1116
      %v1136 = vunpack.c.h.b16 %v1116
      %v1137 = vunpack.c.l.b16 %v1117
      %v1138 = vunpack.c.h.b16 %v1117
      %v1139 = vunpack.c.l.b16 %v1118
      %v1140 = vunpack.c.h.b16 %v1118
      %v1141 = vunpack.c.l.b16 %v1119
      %v1142 = vunpack.c.h.b16 %v1119
      %v1143 = vunpack.c.l.b16 %v1120
      %v1144 = vunpack.c.h.b16 %v1120
      %v1145 = vpack.c.b16 %v1129, %v1129
      %v1146 = vpack.c.b16 %v1130, %v1130
      %v1147 = vpack.c.b16 %v1131, %v1131
      %v1148 = vpack.c.b16 %v1132, %v1132
      %v1149 = vpack.c.b16 %v1133, %v1133
      %v1150 = vpack.c.b16 %v1134, %v1134
      %v1151 = vpack.c.b16 %v1135, %v1135
      %v1152 = vpack.c.b16 %v1136, %v1136
      %v1153 = vpack.c.b16 %v1137, %v1137
      %v1154 = vpack.c.b16 %v1138, %v1138
      %v1155 = vpack.c.b16 %v1139, %v1139
      %v1156 = vpack.c.b16 %v1140, %v1140
      %v1157 = vpack.c.b16 %v1141, %v1141
      %v1158 = vpack.c.b16 %v1142, %v1142
      %v1159 = vpack.c.b16 %v1143, %v1143
      %v1160 = vpack.c.b16 %v1144, %v1144
      %vm1177 = vcmask 257024
      %1178 = vst.msk [vmem:[%s334] sm:$0xf] %vm1177, %v1145
      %1179 = vst.msk [vmem:[%s334 + $0x4] sm:$0xf] %vm1177, %v1146
      %1180 = vst.msk [vmem:[%s334 + $0x8] sm:$0xf] %vm1177, %v1147
      %1181 = vst.msk [vmem:[%s334 + $0xc] sm:$0xf] %vm1177, %v1148
      %1182 = vst.msk [vmem:[%s334 + $0x10] sm:$0xf] %vm1177, %v1149
      %1183 = vst.msk [vmem:[%s334 + $0x14] sm:$0xf] %vm1177, %v1150
      %1184 = vst.msk [vmem:[%s334 + $0x18] sm:$0xf] %vm1177, %v1151
      %1185 = vst.msk [vmem:[%s334 + $0x1c] sm:$0xf] %vm1177, %v1152
      %1186 = vst.msk [vmem:[%s334 + $0x20] sm:$0xf] %vm1177, %v1153
      %1187 = vst.msk [vmem:[%s334 + $0x24] sm:$0xf] %vm1177, %v1154
      %1188 = vst.msk [vmem:[%s334 + $0x28] sm:$0xf] %vm1177, %v1155
      %1189 = vst.msk [vmem:[%s334 + $0x2c] sm:$0xf] %vm1177, %v1156
      %1190 = vst.msk [vmem:[%s334 + $0x30] sm:$0xf] %vm1177, %v1157
      %1191 = vst.msk [vmem:[%s334 + $0x34] sm:$0xf] %vm1177, %v1158
      %1192 = vst.msk [vmem:[%s334 + $0x38] sm:$0xf] %vm1177, %v1159
      %1193 = vst.msk [vmem:[%s334 + $0x3c] sm:$0xf] %vm1177, %v1160
      %v1202 = vunpack.c.l.b16 %v699
      %v1203 = vunpack.c.h.b16 %v699
      %v1204 = vunpack.c.l.b16 %v700
      %v1205 = vunpack.c.h.b16 %v700
      %v1206 = vunpack.c.l.b16 %v701
      %v1207 = vunpack.c.h.b16 %v701
      %v1208 = vunpack.c.l.b16 %v702
      %v1209 = vunpack.c.h.b16 %v702
      %v1210 = vunpack.c.l.b16 %v703
      %v1211 = vunpack.c.h.b16 %v703
      %v1212 = vunpack.c.l.b16 %v704
      %v1213 = vunpack.c.h.b16 %v704
      %v1214 = vunpack.c.l.b16 %v705
      %v1215 = vunpack.c.h.b16 %v705
      %v1216 = vunpack.c.l.b16 %v706
      %v1217 = vunpack.c.h.b16 %v706
      %v1218 = vpack.c.b16 %v1202, %v1202
      %v1219 = vpack.c.b16 %v1203, %v1203
      %v1220 = vpack.c.b16 %v1204, %v1204
      %v1221 = vpack.c.b16 %v1205, %v1205
      %v1222 = vpack.c.b16 %v1206, %v1206
      %v1223 = vpack.c.b16 %v1207, %v1207
      %v1224 = vpack.c.b16 %v1208, %v1208
      %v1225 = vpack.c.b16 %v1209, %v1209
      %v1226 = vpack.c.b16 %v1210, %v1210
      %v1227 = vpack.c.b16 %v1211, %v1211
      %v1228 = vpack.c.b16 %v1212, %v1212
      %v1229 = vpack.c.b16 %v1213, %v1213
      %v1230 = vpack.c.b16 %v1214, %v1214
      %v1231 = vpack.c.b16 %v1215, %v1215
      %v1232 = vpack.c.b16 %v1216, %v1216
      %v1233 = vpack.c.b16 %v1217, %v1217
      %1234 = vrot.lane.b32.xlu0 %v1218, 32
      %v1235 = vpop.permute.xlu0 %1234
      %1236 = vrot.lane.b32.xlu0 %v1219, 32
      %v1237 = vpop.permute.xlu0 %1236
      %1238 = vrot.lane.b32.xlu0 %v1220, 32
      %v1239 = vpop.permute.xlu0 %1238
      %1240 = vrot.lane.b32.xlu0 %v1221, 32
      %v1241 = vpop.permute.xlu0 %1240
      %1242 = vrot.lane.b32.xlu0 %v1222, 32
      %v1243 = vpop.permute.xlu0 %1242
      %1244 = vrot.lane.b32.xlu0 %v1223, 32
      %v1245 = vpop.permute.xlu0 %1244
      %1246 = vrot.lane.b32.xlu0 %v1224, 32
      %v1247 = vpop.permute.xlu0 %1246
      %1248 = vrot.lane.b32.xlu0 %v1225, 32
      %v1249 = vpop.permute.xlu0 %1248
      %1250 = vrot.lane.b32.xlu0 %v1226, 32
      %v1251 = vpop.permute.xlu0 %1250
      %1252 = vrot.lane.b32.xlu0 %v1227, 32
      %v1253 = vpop.permute.xlu0 %1252
      %1254 = vrot.lane.b32.xlu0 %v1228, 32
      %v1255 = vpop.permute.xlu0 %1254
      %1256 = vrot.lane.b32.xlu0 %v1229, 32
      %v1257 = vpop.permute.xlu0 %1256
      %1258 = vrot.lane.b32.xlu0 %v1230, 32
      %v1259 = vpop.permute.xlu0 %1258
      %1260 = vrot.lane.b32.xlu0 %v1231, 32
      %v1261 = vpop.permute.xlu0 %1260
      %1262 = vrot.lane.b32.xlu0 %v1232, 32
      %v1263 = vpop.permute.xlu0 %1262
      %1264 = vrot.lane.b32.xlu0 %v1233, 32
      %v1265 = vpop.permute.xlu0 %1264
      %vm1282 = vcmask 322816
      %1283 = vst.msk [vmem:[%s334] sm:$0xf] %vm1282, %v1235
      %1284 = vst.msk [vmem:[%s334 + $0x4] sm:$0xf] %vm1282, %v1237
      %1285 = vst.msk [vmem:[%s334 + $0x8] sm:$0xf] %vm1282, %v1239
      %1286 = vst.msk [vmem:[%s334 + $0xc] sm:$0xf] %vm1282, %v1241
      %1287 = vst.msk [vmem:[%s334 + $0x10] sm:$0xf] %vm1282, %v1243
      %1288 = vst.msk [vmem:[%s334 + $0x14] sm:$0xf] %vm1282, %v1245
      %1289 = vst.msk [vmem:[%s334 + $0x18] sm:$0xf] %vm1282, %v1247
      %1290 = vst.msk [vmem:[%s334 + $0x1c] sm:$0xf] %vm1282, %v1249
      %1291 = vst.msk [vmem:[%s334 + $0x20] sm:$0xf] %vm1282, %v1251
      %1292 = vst.msk [vmem:[%s334 + $0x24] sm:$0xf] %vm1282, %v1253
      %1293 = vst.msk [vmem:[%s334 + $0x28] sm:$0xf] %vm1282, %v1255
      %1294 = vst.msk [vmem:[%s334 + $0x2c] sm:$0xf] %vm1282, %v1257
      %1295 = vst.msk [vmem:[%s334 + $0x30] sm:$0xf] %vm1282, %v1259
      %1296 = vst.msk [vmem:[%s334 + $0x34] sm:$0xf] %vm1282, %v1261
      %1297 = vst.msk [vmem:[%s334 + $0x38] sm:$0xf] %vm1282, %v1263
      %1298 = vst.msk [vmem:[%s334 + $0x3c] sm:$0xf] %vm1282, %v1265
      %s1299 = smul.u32 16, %s20
      %p1300 = scmp.lt.s32.totalorder %s1299, 47
      %s1301 = scalar_select %p1300, %s1299, 47
      %s1302 = smul.addr %s1301, 4
      %s1303 = scalar_lea.vmem %s9, %s1302
      // Predicated region
      $region57: #{uwan_forward.1} parent=55 // pred_check
        %p1304 = pneg %p232
      $region58: #{uwan_forward.1} parent=55 // pred_check_branch
        %1306 = sbr.rel (%p1304) target = $region60
      $region59: #{uwan_forward.1} parent=55 // pred_region
        %s1307 = smul.u32 16, %s20
      $region60: #{uwan_forward.1} parent=55 // pred_fallthru
        _
    $region56: #{uwan_forward.1} parent=5 // pred_fallthru
      _
    %p1308 = scmp.le.s32.totalorder 2, %s15
    // Predicated region
    $region61: #{uwan_forward.1} parent=5 // pred_check
      %p1309 = pneg %p1308
    $region62: #{uwan_forward.1} parent=5 // pred_check_branch
      %1311 = sbr.rel (%p1309) target = $region64
    $region63: #{uwan_forward.1} parent=5 // pred_region
      %s1312 = ssub.s32 %s15, 2
      // Predicated region
      $region65: #{uwan_forward.1} parent=63 // pred_check
        %p1313 = pneg %p238
      $region66: #{uwan_forward.1} parent=63 // pred_check_branch
        %1315 = sbr.rel (%p1313) target = $region68
      $region67: #{uwan_forward.1} parent=63 // pred_region
        %s1316 = smul.u32 16, %s21
        %p1317 = scmp.lt.s32.totalorder %s1316, 47
        %s1318 = scalar_select %p1317, %s1316, 47
        %s1319 = smul.addr %s1318, 4
        %s1320 = scalar_lea.vmem %s9, %s1319
      $region68: #{uwan_forward.1} parent=63 // pred_fallthru
        _
    $region64: #{uwan_forward.1} parent=5 // pred_fallthru
      _
  $region6: #{uwan_forward.1} parent=0 // loop_footer
    %s19 = sadd.s32 1, %s15
  $region7: #{uwan_forward.1} parent=0 // loop_footer_branch
    %14 = sbr.rel target = $region3
  $region8: #{uwan_forward.1} parent=0 // loop_exit
    _

</llo_original>
